<compile_context>
chip_gen: v6e
topology: v6e:2x2x1
jax: 0.10.0
libtpu: 0.0.40
codegen_flags: <defaults>
</compile_context>

<pallas_src>
import functools

import jax
import jax.numpy as jnp
from jax.experimental import pallas as pl
from jax.experimental.pallas import tpu as pltpu

LANE = 128
SUBLANE = 8
MAX_LANE_TILE = 1024                 # lanes per block when size is 128-aligned
MAX_BATCH_TILE = 4096                # hard cap on rows per block
TARGET_BLOCK_BYTES = 2 * 1024 * 1024  # ~2 MiB f32 output blocks


def _round_up(n, m):
    return ((n + m - 1) // m) * m


# ----------------------------- Pallas kernel ------------------------------ #
def _learnable_embedding_kernel(x_ref, w_ref, b_ref, out_ref, *, size):
    # x_ref:   (TILE_B, 1)       -- streamed per batch tile (resident across lane tiles)
    # w_ref:   (1, TILE_N)       -- resident across batch tiles
    # b_ref:   (1, TILE_N)       -- resident across batch tiles
    # out_ref: (TILE_B, TILE_N)
    x_scaled = x_ref[...] / jnp.float32(size)                    # (TILE_B, 1)
    out_ref[...] = (x_scaled * w_ref[...] + b_ref[...]).astype(out_ref.dtype)


def learnable_embedding_pallas(x, weight, bias, *, size, tile_b=None,
                               out_dtype=jnp.float32):
    """LearnableEmbedding.forward.

    x:      any shape (cast to f32, like torch's .float()).
    weight: (size, 1)  -- nn.Linear(1, size).weight
    bias:   (size,)    -- nn.Linear(1, size).bias
    Returns x.shape + (size,) in `out_dtype` (float32 by default, like torch).
    """
    lead_shape = x.shape
    xf = x.reshape(-1, 1).astype(jnp.float32)                    # (B, 1)
    B = xf.shape[0]

    if B == 0:  # zero-length grid guard
        return jnp.zeros((*lead_shape, size), out_dtype)

    # ---- lane (embedding-dim) tiling ----
    if size % LANE == 0:
        tile_n = min(size, MAX_LANE_TILE)                        # 128-aligned blocks
    else:
        # Block last dim equal to the full array dim (always legal); only the
        # tail lane group uses masked vst. Avoids any padded-output HBM pass.
        tile_n = size

    # ---- batch tiling: ~2 MiB f32 output blocks ----
    if tile_b is None:
        tile_b = TARGET_BLOCK_BYTES // (4 * max(tile_n, 1))
    tile_b = max(SUBLANE, min(int(tile_b), MAX_BATCH_TILE))
    tile_b = _round_up(tile_b, SUBLANE)                          # (8,128) rule
    tile_b = min(tile_b, _round_up(B, SUBLANE))                  # don't exceed batch

    w_row = weight.astype(jnp.float32).reshape(1, size)
    b_row = bias.astype(jnp.float32).reshape(1, size)

    grid = (pl.cdiv(B, tile_b), pl.cdiv(size, tile_n))

    out = pl.pallas_call(
        functools.partial(_learnable_embedding_kernel, size=size),
        out_shape=jax.ShapeDtypeStruct((B, size), out_dtype),    # exact shape, no slice
        grid=grid,
        in_specs=[
            pl.BlockSpec((tile_b, 1), lambda i, j: (i, 0)),      # x: batch tiles
            pl.BlockSpec((1, tile_n), lambda i, j: (0, j)),      # weight row: lane tiles
            pl.BlockSpec((1, tile_n), lambda i, j: (0, j)),      # bias row: lane tiles
        ],
        out_specs=pl.BlockSpec((tile_b, tile_n), lambda i, j: (i, j)),
        compiler_params=pltpu.CompilerParams(
            dimension_semantics=("parallel", "parallel"),        # megacore-shardable
        ),
    )(xf, w_row, b_row)

    return out.reshape(*lead_shape, size)


# ------------------------------ reference ---------------------------------- #
def learnable_embedding_reference(x, weight, bias, *, size):
    xf = x.reshape(-1, 1).astype(jnp.float32) / float(size)
    out = xf @ weight.astype(jnp.float32).T + bias.astype(jnp.float32)[None, :]
    return out.reshape(*x.shape, size)


if __name__ == "__main__":
    key = jax.random.PRNGKey(0)
    keys = jax.random.split(key, 9)

    def check(x, w, b, size, **kw):
        out = jax.block_until_ready(
            learnable_embedding_pallas(x, w, b, size=size, **kw))
        ref = learnable_embedding_reference(x, w, b, size=size)
        assert out.shape == ref.shape, (out.shape, ref.shape)
        assert jnp.allclose(out, ref, atol=1e-5, rtol=1e-5), \
            float(jnp.max(jnp.abs(out - ref)))

    # ---- main case: size=128, leading shape (2,150) -> B=300 (ragged batch edge)
    SIZE = 128
    w = jax.random.uniform(keys[0], (SIZE, 1), jnp.float32, -1.0, 1.0)  # fan_in=1 init
    b = jax.random.uniform(keys[1], (SIZE,), jnp.float32, -1.0, 1.0)
    x = jax.random.randint(keys[2], (2, 150), 0, 1000).astype(jnp.float32)
    check(x, w, b, SIZE)                       # auto tile_b (~4096 -> clamped to 304)
    check(x, w, b, SIZE, tile_b=100)           # user tile_b rounded up to 104, 3 blocks

    # ---- non-128-multiple size -> full-width lane block, masked tail stores
    SIZE2, B2 = 80, 4
    w2 = jax.random.uniform(keys[3], (SIZE2, 1), jnp.float32, -1.0, 1.0)
    b2 = jax.random.uniform(keys[4], (SIZE2,), jnp.float32, -1.0, 1.0)
    x2 = jax.random.uniform(keys[5], (B2,), jnp.float32, 0.0, 100.0)
    check(x2, w2, b2, SIZE2)

    # ---- size > MAX_LANE_TILE -> lane-tiled grid with a partial edge lane block
    SIZE3, B3 = 1536, 16
    w3 = jax.random.uniform(keys[6], (SIZE3, 1), jnp.float32, -1.0, 1.0)
    b3 = jax.random.uniform(keys[7], (SIZE3,), jnp.float32, -1.0, 1.0)
    x3 = jax.random.uniform(keys[8], (B3,), jnp.float32, 0.0, 100.0)
    check(x3, w3, b3, SIZE3)

    print("KERNEL_OK")
</pallas_src>

<mosaic_0001>
module attributes {stable_mosaic.version = 11 : i64} {
  func.func @_learnable_embedding_kernel(%arg0: i32, %arg1: i32, %arg2: memref<304x1xf32, #tpu.memory_space<vmem>>, %arg3: memref<1x128xf32, #tpu.memory_space<vmem>>, %arg4: memref<1x128xf32, #tpu.memory_space<vmem>>, %arg5: memref<304x128xf32, #tpu.memory_space<vmem>>) attributes {dimension_semantics = [#tpu.dimension_semantics<parallel>, #tpu.dimension_semantics<parallel>], iteration_bounds = array<i64: 1, 1>, scalar_prefetch = 0 : i64, scratch_operands = 0 : i64, tpu.core_type = #tpu.core_type<tc>, window_params = [{transform_indices = @transform_0, window_bounds = array<i64: 304, 1>}, {transform_indices = @transform_1, window_bounds = array<i64: 1, 128>}, {transform_indices = @transform_2, window_bounds = array<i64: 1, 128>}, {transform_indices = @transform_3, window_bounds = array<i64: 304, 128>}]} {
    %c0 = arith.constant 0 : index
    %c0_0 = arith.constant 0 : index
    %0 = vector.load %arg2[%c0, %c0_0] : memref<304x1xf32, #tpu.memory_space<vmem>>, vector<304x1xf32>
    %cst = arith.constant 1.280000e+02 : f32
    %1 = vector.broadcast %cst : f32 to vector<304x1xf32>
    %2 = arith.divf %0, %1 : vector<304x1xf32>
    %c0_1 = arith.constant 0 : index
    %c0_2 = arith.constant 0 : index
    %3 = vector.load %arg3[%c0_1, %c0_2] : memref<1x128xf32, #tpu.memory_space<vmem>>, vector<1x128xf32>
    %4 = vector.broadcast %2 : vector<304x1xf32> to vector<304x128xf32>
    %5 = vector.broadcast %3 : vector<1x128xf32> to vector<304x128xf32>
    %6 = arith.mulf %4, %5 : vector<304x128xf32>
    %c0_3 = arith.constant 0 : index
    %c0_4 = arith.constant 0 : index
    %7 = vector.load %arg4[%c0_3, %c0_4] : memref<1x128xf32, #tpu.memory_space<vmem>>, vector<1x128xf32>
    %8 = vector.broadcast %7 : vector<1x128xf32> to vector<304x128xf32>
    %9 = arith.addf %6, %8 : vector<304x128xf32>
    %c0_5 = arith.constant 0 : index
    %c0_6 = arith.constant 0 : index
    %10 = vector.load %arg5[%c0_5, %c0_6] : memref<304x128xf32, #tpu.memory_space<vmem>>, vector<304x128xf32>
    tpu.vector_store %arg5[%c0_5, %c0_6], %9 {strides = array<i32>} : memref<304x128xf32, #tpu.memory_space<vmem>>, vector<304x128xf32>,
    return
  }
  func.func @transform_0(%arg0: i32, %arg1: i32) -> (i32, i32) {
    %c0_i32 = arith.constant 0 : i32
    %c0_i32_0 = arith.constant 0 : i32
    return %arg0, %c0_i32 : i32, i32
  }
  func.func @transform_1(%arg0: i32, %arg1: i32) -> (i32, i32) {
    %c0_i32 = arith.constant 0 : i32
    %c0_i32_0 = arith.constant 0 : i32
    return %c0_i32, %arg1 : i32, i32
  }
  func.func @transform_2(%arg0: i32, %arg1: i32) -> (i32, i32) {
    %c0_i32 = arith.constant 0 : i32
    %c0_i32_0 = arith.constant 0 : i32
    return %c0_i32, %arg1 : i32, i32
  }
  func.func @transform_3(%arg0: i32, %arg1: i32) -> (i32, i32) {
    %c0_i32 = arith.constant 0 : i32
    return %arg0, %arg1 : i32, i32
  }
}

</mosaic_0001>

<llo_original>
// kernel: tpu_custom_call.1
$region0: #{tpu_custom_call.1}
  #allocation0 [shape = 'u32[]', space=smem, size = 0x4, offset = 0x4, fixed_abs, tag = 'smem constant byte address 0x4 - core index']
  #allocation1 [shape = 'u32[144,128]{1,0:T(1,128)}', space=vmem, size = 0x12000, scoped, tag = 'internal scratch']
  %s0 = inlined_call_operand.vmem [shape: f32[300,1], index: 0, kind: input, shape index: {}]
  %s1 = inlined_call_operand.vmem [shape: f32[1,128], index: 1, kind: input, shape index: {}]
  %s2 = inlined_call_operand.vmem [shape: f32[1,128], index: 2, kind: input, shape index: {}]
  %s3 = inlined_call_operand.hbm [shape: f32[300,128], index: 3, kind: output, shape index: {}]
  %s4 = sld [smem:[#allocation0]]
  $region22: #{tpu_custom_call.1} parent=0
    _
  %s6 = ssub.s32 1, %s4
  %s7 = scalar_select 0, %s6, %s4
  $region1: #{tpu_custom_call.1} parent=0
    #allocation2 [shape = 'u8[155648]{0}', space=vmem, size = 0x26000, scoped, tag = 'output window, operand 0, single buffered']
    #allocation3 [shape = 's32[1]{0}', space=sflag, size = 0x4, scoped, tag = 'scoped memory for tpu_custom_call.1']
    %8 = vsyncpa [#allocation3], 0
    // Predicated region
    $region2: #{tpu_custom_call.1} parent=1 // pred_check
      _
    $region3: #{tpu_custom_call.1} parent=1 // pred_check_branch
      %10 = sbr.rel (0) target = $region5
    $region4: #{tpu_custom_call.1} parent=1 // pred_region
      _
    $region5: #{tpu_custom_call.1} parent=1 // pred_fallthru
      _
    // Predicated region
    $region6: #{tpu_custom_call.1} parent=1 // pred_check
      _
    $region7: #{tpu_custom_call.1} parent=1 // pred_check_branch
      %12 = sbr.rel (0) target = $region9
    $region8: #{tpu_custom_call.1} parent=1 // pred_region
      _
    $region9: #{tpu_custom_call.1} parent=1 // pred_fallthru
      _
    // Predicated region
    $region10: #{tpu_custom_call.1} parent=1 // pred_check
      _
    $region11: #{tpu_custom_call.1} parent=1 // pred_check_branch
      %14 = sbr.rel (0) target = $region13
    $region12: #{tpu_custom_call.1} parent=1 // pred_region
      _
    $region13: #{tpu_custom_call.1} parent=1 // pred_fallthru
      _
    %v15 = vld [vmem:[%s0] sm:$0xff]
    %v16 = vld [vmem:[%s0 + $0x8] sm:$0xff]
    %v17 = vld [vmem:[%s0 + $0x10] sm:$0xff]
    %v18 = vld [vmem:[%s0 + $0x18] sm:$0xff]
    %v19 = vld [vmem:[%s0 + $0x20] sm:$0xff]
    %v20 = vld [vmem:[%s0 + $0x28] sm:$0xff]
    %v21 = vld [vmem:[%s0 + $0x30] sm:$0xff]
    %v22 = vld [vmem:[%s0 + $0x38] sm:$0xff]
    %v23 = vld [vmem:[%s0 + $0x40] sm:$0xff]
    %v24 = vld [vmem:[%s0 + $0x48] sm:$0xff]
    %v25 = vld [vmem:[%s0 + $0x50] sm:$0xff]
    %v26 = vld [vmem:[%s0 + $0x58] sm:$0xff]
    %v27 = vld [vmem:[%s0 + $0x60] sm:$0xff]
    %v28 = vld [vmem:[%s0 + $0x68] sm:$0xff]
    %v29 = vld [vmem:[%s0 + $0x70] sm:$0xff]
    %v30 = vld [vmem:[%s0 + $0x78] sm:$0xff]
    %v31 = vld [vmem:[%s0 + $0x80] sm:$0xff]
    %v32 = vld [vmem:[%s0 + $0x88] sm:$0xff]
    %v33 = vld [vmem:[%s0 + $0x90] sm:$0xff]
    %v34 = vld [vmem:[%s0 + $0x98] sm:$0xff]
    %v35 = vld [vmem:[%s0 + $0xa0] sm:$0xff]
    %v36 = vld [vmem:[%s0 + $0xa8] sm:$0xff]
    %v37 = vld [vmem:[%s0 + $0xb0] sm:$0xff]
    %v38 = vld [vmem:[%s0 + $0xb8] sm:$0xff]
    %v39 = vld [vmem:[%s0 + $0xc0] sm:$0xff]
    %v40 = vld [vmem:[%s0 + $0xc8] sm:$0xff]
    %v41 = vld [vmem:[%s0 + $0xd0] sm:$0xff]
    %v42 = vld [vmem:[%s0 + $0xd8] sm:$0xff]
    %v43 = vld [vmem:[%s0 + $0xe0] sm:$0xff]
    %v44 = vld [vmem:[%s0 + $0xe8] sm:$0xff]
    %v45 = vld [vmem:[%s0 + $0xf0] sm:$0xff]
    %v46 = vld [vmem:[%s0 + $0xf8] sm:$0xff]
    %v47 = vld [vmem:[%s0 + $0x100] sm:$0xff]
    %v48 = vld [vmem:[%s0 + $0x108] sm:$0xff]
    %v49 = vld [vmem:[%s0 + $0x110] sm:$0xff]
    %v50 = vld [vmem:[%s0 + $0x118] sm:$0xff]
    %v51 = vld [vmem:[%s0 + $0x120] sm:$0xff]
    %v52 = vld [vmem:[%s0 + $0x128] sm:$0xff]
    %v53 = vrcp.pop 128.0
    %v54 = vmul.f32 %v15, %v53
    %v55 = vmul.f32 %v16, %v53
    %v56 = vmul.f32 %v17, %v53
    %v57 = vmul.f32 %v18, %v53
    %v58 = vmul.f32 %v19, %v53
    %v59 = vmul.f32 %v20, %v53
    %v60 = vmul.f32 %v21, %v53
    %v61 = vmul.f32 %v22, %v53
    %v62 = vmul.f32 %v23, %v53
    %v63 = vmul.f32 %v24, %v53
    %v64 = vmul.f32 %v25, %v53
    %v65 = vmul.f32 %v26, %v53
    %v66 = vmul.f32 %v27, %v53
    %v67 = vmul.f32 %v28, %v53
    %v68 = vmul.f32 %v29, %v53
    %v69 = vmul.f32 %v30, %v53
    %v70 = vmul.f32 %v31, %v53
    %v71 = vmul.f32 %v32, %v53
    %v72 = vmul.f32 %v33, %v53
    %v73 = vmul.f32 %v34, %v53
    %v74 = vmul.f32 %v35, %v53
    %v75 = vmul.f32 %v36, %v53
    %v76 = vmul.f32 %v37, %v53
    %v77 = vmul.f32 %v38, %v53
    %v78 = vmul.f32 %v39, %v53
    %v79 = vmul.f32 %v40, %v53
    %v80 = vmul.f32 %v41, %v53
    %v81 = vmul.f32 %v42, %v53
    %v82 = vmul.f32 %v43, %v53
    %v83 = vmul.f32 %v44, %v53
    %v84 = vmul.f32 %v45, %v53
    %v85 = vmul.f32 %v46, %v53
    %v86 = vmul.f32 %v47, %v53
    %v87 = vmul.f32 %v48, %v53
    %v88 = vmul.f32 %v49, %v53
    %v89 = vmul.f32 %v50, %v53
    %v90 = vmul.f32 %v51, %v53
    %v91 = vmul.f32 %v52, %v53
    %v92 = vld [vmem:[%s1] sm:$0x1]
    %94 = vset.pattern.permute.xlu0 0
    %95 = vperm.xlu0 %94, %v54
    %v96 = vpop.permute.xlu0 %95
    %99 = vset.pattern.permute.xlu0 0
    %100 = vperm.xlu0 %99, %v55
    %v101 = vpop.permute.xlu0 %100
    %104 = vset.pattern.permute.xlu0 0
    %105 = vperm.xlu0 %104, %v56
    %v106 = vpop.permute.xlu0 %105
    %109 = vset.pattern.permute.xlu0 0
    %110 = vperm.xlu0 %109, %v57
    %v111 = vpop.permute.xlu0 %110
    %114 = vset.pattern.permute.xlu0 0
    %115 = vperm.xlu0 %114, %v58
    %v116 = vpop.permute.xlu0 %115
    %119 = vset.pattern.permute.xlu0 0
    %120 = vperm.xlu0 %119, %v59
    %v121 = vpop.permute.xlu0 %120
    %124 = vset.pattern.permute.xlu0 0
    %125 = vperm.xlu0 %124, %v60
    %v126 = vpop.permute.xlu0 %125
    %129 = vset.pattern.permute.xlu0 0
    %130 = vperm.xlu0 %129, %v61
    %v131 = vpop.permute.xlu0 %130
    %134 = vset.pattern.permute.xlu0 0
    %135 = vperm.xlu0 %134, %v62
    %v136 = vpop.permute.xlu0 %135
    %139 = vset.pattern.permute.xlu0 0
    %140 = vperm.xlu0 %139, %v63
    %v141 = vpop.permute.xlu0 %140
    %144 = vset.pattern.permute.xlu0 0
    %145 = vperm.xlu0 %144, %v64
    %v146 = vpop.permute.xlu0 %145
    %149 = vset.pattern.permute.xlu0 0
    %150 = vperm.xlu0 %149, %v65
    %v151 = vpop.permute.xlu0 %150
    %154 = vset.pattern.permute.xlu0 0
    %155 = vperm.xlu0 %154, %v66
    %v156 = vpop.permute.xlu0 %155
    %159 = vset.pattern.permute.xlu0 0
    %160 = vperm.xlu0 %159, %v67
    %v161 = vpop.permute.xlu0 %160
    %164 = vset.pattern.permute.xlu0 0
    %165 = vperm.xlu0 %164, %v68
    %v166 = vpop.permute.xlu0 %165
    %169 = vset.pattern.permute.xlu0 0
    %170 = vperm.xlu0 %169, %v69
    %v171 = vpop.permute.xlu0 %170
    %174 = vset.pattern.permute.xlu0 0
    %175 = vperm.xlu0 %174, %v70
    %v176 = vpop.permute.xlu0 %175
    %179 = vset.pattern.permute.xlu0 0
    %180 = vperm.xlu0 %179, %v71
    %v181 = vpop.permute.xlu0 %180
    %184 = vset.pattern.permute.xlu0 0
    %185 = vperm.xlu0 %184, %v72
    %v186 = vpop.permute.xlu0 %185
    %189 = vset.pattern.permute.xlu0 0
    %190 = vperm.xlu0 %189, %v73
    %v191 = vpop.permute.xlu0 %190
    %194 = vset.pattern.permute.xlu0 0
    %195 = vperm.xlu0 %194, %v74
    %v196 = vpop.permute.xlu0 %195
    %199 = vset.pattern.permute.xlu0 0
    %200 = vperm.xlu0 %199, %v75
    %v201 = vpop.permute.xlu0 %200
    %204 = vset.pattern.permute.xlu0 0
    %205 = vperm.xlu0 %204, %v76
    %v206 = vpop.permute.xlu0 %205
    %209 = vset.pattern.permute.xlu0 0
    %210 = vperm.xlu0 %209, %v77
    %v211 = vpop.permute.xlu0 %210
    %214 = vset.pattern.permute.xlu0 0
    %215 = vperm.xlu0 %214, %v78
    %v216 = vpop.permute.xlu0 %215
    %219 = vset.pattern.permute.xlu0 0
    %220 = vperm.xlu0 %219, %v79
    %v221 = vpop.permute.xlu0 %220
    %224 = vset.pattern.permute.xlu0 0
    %225 = vperm.xlu0 %224, %v80
    %v226 = vpop.permute.xlu0 %225
    %229 = vset.pattern.permute.xlu0 0
    %230 = vperm.xlu0 %229, %v81
    %v231 = vpop.permute.xlu0 %230
    %234 = vset.pattern.permute.xlu0 0
    %235 = vperm.xlu0 %234, %v82
    %v236 = vpop.permute.xlu0 %235
    %239 = vset.pattern.permute.xlu0 0
    %240 = vperm.xlu0 %239, %v83
    %v241 = vpop.permute.xlu0 %240
    %244 = vset.pattern.permute.xlu0 0
    %245 = vperm.xlu0 %244, %v84
    %v246 = vpop.permute.xlu0 %245
    %249 = vset.pattern.permute.xlu0 0
    %250 = vperm.xlu0 %249, %v85
    %v251 = vpop.permute.xlu0 %250
    %254 = vset.pattern.permute.xlu0 0
    %255 = vperm.xlu0 %254, %v86
    %v256 = vpop.permute.xlu0 %255
    %259 = vset.pattern.permute.xlu0 0
    %260 = vperm.xlu0 %259, %v87
    %v261 = vpop.permute.xlu0 %260
    %264 = vset.pattern.permute.xlu0 0
    %265 = vperm.xlu0 %264, %v88
    %v266 = vpop.permute.xlu0 %265
    %269 = vset.pattern.permute.xlu0 0
    %270 = vperm.xlu0 %269, %v89
    %v271 = vpop.permute.xlu0 %270
    %274 = vset.pattern.permute.xlu0 0
    %275 = vperm.xlu0 %274, %v90
    %v276 = vpop.permute.xlu0 %275
    %279 = vset.pattern.permute.xlu0 0
    %280 = vperm.xlu0 %279, %v91
    %v281 = vpop.permute.xlu0 %280
    %v284 = vlaneseq
    %v285 = vshrl.u32 %v284, 7
    %v286 = vsub.s32 0, %v285
    %v287 = vrot.slane %v92, %v286
    %v289 = vmul.f32 %v96, %v287
    %v290 = vmul.f32 %v101, %v287
    %v291 = vmul.f32 %v106, %v287
    %v292 = vmul.f32 %v111, %v287
    %v293 = vmul.f32 %v116, %v287
    %v294 = vmul.f32 %v121, %v287
    %v295 = vmul.f32 %v126, %v287
    %v296 = vmul.f32 %v131, %v287
    %v297 = vmul.f32 %v136, %v287
    %v298 = vmul.f32 %v141, %v287
    %v299 = vmul.f32 %v146, %v287
    %v300 = vmul.f32 %v151, %v287
    %v301 = vmul.f32 %v156, %v287
    %v302 = vmul.f32 %v161, %v287
    %v303 = vmul.f32 %v166, %v287
    %v304 = vmul.f32 %v171, %v287
    %v305 = vmul.f32 %v176, %v287
    %v306 = vmul.f32 %v181, %v287
    %v307 = vmul.f32 %v186, %v287
    %v308 = vmul.f32 %v191, %v287
    %v309 = vmul.f32 %v196, %v287
    %v310 = vmul.f32 %v201, %v287
    %v311 = vmul.f32 %v206, %v287
    %v312 = vmul.f32 %v211, %v287
    %v313 = vmul.f32 %v216, %v287
    %v314 = vmul.f32 %v221, %v287
    %v315 = vmul.f32 %v226, %v287
    %v316 = vmul.f32 %v231, %v287
    %v317 = vmul.f32 %v236, %v287
    %v318 = vmul.f32 %v241, %v287
    %v319 = vmul.f32 %v246, %v287
    %v320 = vmul.f32 %v251, %v287
    %v321 = vmul.f32 %v256, %v287
    %v322 = vmul.f32 %v261, %v287
    %v323 = vmul.f32 %v266, %v287
    %v324 = vmul.f32 %v271, %v287
    %v325 = vmul.f32 %v276, %v287
    %v326 = vmul.f32 %v281, %v287
    %v327 = vld [vmem:[%s2] sm:$0x1]
    %v329 = vlaneseq
    %v330 = vshrl.u32 %v329, 7
    %v331 = vsub.s32 0, %v330
    %v332 = vrot.slane %v327, %v331
    %v334 = vadd.f32 %v289, %v332
    %v335 = vadd.f32 %v290, %v332
    %v336 = vadd.f32 %v291, %v332
    %v337 = vadd.f32 %v292, %v332
    %v338 = vadd.f32 %v293, %v332
    %v339 = vadd.f32 %v294, %v332
    %v340 = vadd.f32 %v295, %v332
    %v341 = vadd.f32 %v296, %v332
    %v342 = vadd.f32 %v297, %v332
    %v343 = vadd.f32 %v298, %v332
    %v344 = vadd.f32 %v299, %v332
    %v345 = vadd.f32 %v300, %v332
    %v346 = vadd.f32 %v301, %v332
    %v347 = vadd.f32 %v302, %v332
    %v348 = vadd.f32 %v303, %v332
    %v349 = vadd.f32 %v304, %v332
    %v350 = vadd.f32 %v305, %v332
    %v351 = vadd.f32 %v306, %v332
    %v352 = vadd.f32 %v307, %v332
    %v353 = vadd.f32 %v308, %v332
    %v354 = vadd.f32 %v309, %v332
    %v355 = vadd.f32 %v310, %v332
    %v356 = vadd.f32 %v311, %v332
    %v357 = vadd.f32 %v312, %v332
    %v358 = vadd.f32 %v313, %v332
    %v359 = vadd.f32 %v314, %v332
    %v360 = vadd.f32 %v315, %v332
    %v361 = vadd.f32 %v316, %v332
    %v362 = vadd.f32 %v317, %v332
    %v363 = vadd.f32 %v318, %v332
    %v364 = vadd.f32 %v319, %v332
    %v365 = vadd.f32 %v320, %v332
    %v366 = vadd.f32 %v321, %v332
    %v367 = vadd.f32 %v322, %v332
    %v368 = vadd.f32 %v323, %v332
    %v369 = vadd.f32 %v324, %v332
    %v370 = vadd.f32 %v325, %v332
    %v371 = vadd.f32 %v326, %v332
    %372 = vst [vmem:[#allocation2] sm:$0xff] %v334
    %373 = vst [vmem:[#allocation2 + $0x8] sm:$0xff] %v335
    %374 = vst [vmem:[#allocation2 + $0x10] sm:$0xff] %v336
    %375 = vst [vmem:[#allocation2 + $0x18] sm:$0xff] %v337
    %376 = vst [vmem:[#allocation2 + $0x20] sm:$0xff] %v338
    %377 = vst [vmem:[#allocation2 + $0x28] sm:$0xff] %v339
    %378 = vst [vmem:[#allocation2 + $0x30] sm:$0xff] %v340
    %379 = vst [vmem:[#allocation2 + $0x38] sm:$0xff] %v341
    %380 = vst [vmem:[#allocation2 + $0x40] sm:$0xff] %v342
    %381 = vst [vmem:[#allocation2 + $0x48] sm:$0xff] %v343
    %382 = vst [vmem:[#allocation2 + $0x50] sm:$0xff] %v344
    %383 = vst [vmem:[#allocation2 + $0x58] sm:$0xff] %v345
    %384 = vst [vmem:[#allocation2 + $0x60] sm:$0xff] %v346
    %385 = vst [vmem:[#allocation2 + $0x68] sm:$0xff] %v347
    %386 = vst [vmem:[#allocation2 + $0x70] sm:$0xff] %v348
    %387 = vst [vmem:[#allocation2 + $0x78] sm:$0xff] %v349
    %388 = vst [vmem:[#allocation2 + $0x80] sm:$0xff] %v350
    %389 = vst [vmem:[#allocation2 + $0x88] sm:$0xff] %v351
    %390 = vst [vmem:[#allocation2 + $0x90] sm:$0xff] %v352
    %391 = vst [vmem:[#allocation2 + $0x98] sm:$0xff] %v353
    %392 = vst [vmem:[#allocation2 + $0xa0] sm:$0xff] %v354
    %393 = vst [vmem:[#allocation2 + $0xa8] sm:$0xff] %v355
    %394 = vst [vmem:[#allocation2 + $0xb0] sm:$0xff] %v356
    %395 = vst [vmem:[#allocation2 + $0xb8] sm:$0xff] %v357
    %396 = vst [vmem:[#allocation2 + $0xc0] sm:$0xff] %v358
    %397 = vst [vmem:[#allocation2 + $0xc8] sm:$0xff] %v359
    %398 = vst [vmem:[#allocation2 + $0xd0] sm:$0xff] %v360
    %399 = vst [vmem:[#allocation2 + $0xd8] sm:$0xff] %v361
    %400 = vst [vmem:[#allocation2 + $0xe0] sm:$0xff] %v362
    %401 = vst [vmem:[#allocation2 + $0xe8] sm:$0xff] %v363
    %402 = vst [vmem:[#allocation2 + $0xf0] sm:$0xff] %v364
    %403 = vst [vmem:[#allocation2 + $0xf8] sm:$0xff] %v365
    %404 = vst [vmem:[#allocation2 + $0x100] sm:$0xff] %v366
    %405 = vst [vmem:[#allocation2 + $0x108] sm:$0xff] %v367
    %406 = vst [vmem:[#allocation2 + $0x110] sm:$0xff] %v368
    %407 = vst [vmem:[#allocation2 + $0x118] sm:$0xff] %v369
    %408 = vst [vmem:[#allocation2 + $0x120] sm:$0xff] %v370
    %409 = vst [vmem:[#allocation2 + $0x128] sm:$0xff] %v371
    // Predicated region
    $region14: #{tpu_custom_call.1} parent=1 // pred_check
      _
    $region15: #{tpu_custom_call.1} parent=1 // pred_check_branch
      %411 = sbr.rel (0) target = $region17
    $region16: #{tpu_custom_call.1} parent=1 // pred_region
      %s413 = ssub.s32 4864, 4864
      %414 = vsyncadd [#allocation3], %s413
      %s415 = sshll.u32 [#allocation2], 4
      %s416 = int_to_ptr.vmem [resolvable:$true] %s415
      %421 = dma.vmem_to_hbm [thread:$0]  %s416, 4864, %s3, [#allocation3], 128, 128, 8
    $region17: #{tpu_custom_call.1} parent=1 // pred_fallthru
      _
    // Predicated region
    $region18: #{tpu_custom_call.1} parent=1 // pred_check
      _
    $region19: #{tpu_custom_call.1} parent=1 // pred_check_branch
      %423 = sbr.rel (0) target = $region21
    $region20: #{tpu_custom_call.1} parent=1 // pred_region
      %424 = dma.done [#allocation3], 4864
    $region21: #{tpu_custom_call.1} parent=1 // pred_fallthru
      _
    %425 = vsyncpa [#allocation3], 1

</llo_original>
